<compile_context>
chip_gen: v5e
topology: v5e:2x2
jax: 0.10.0
libtpu: 0.0.40
codegen_flags: <defaults>
</compile_context>

<pallas_src>
import jax
import jax.numpy as jnp
from jax.experimental import pallas as pl
from jax.experimental.pallas import tpu as pltpu


# ---------------------------------------------------------------------------
# Fused Pallas kernel: fc1 + ReLU + fc2 + log_softmax(dim=1)
# ---------------------------------------------------------------------------
def _mlp_kernel(x_ref, w1_ref, b1_ref, w2_ref, b2_ref, o_ref):
    # x_ref:  (TB, D)    w1_ref: (D, H)   b1_ref: (1, H)
    # w2_ref: (H, O)     b2_ref: (1, O)   o_ref:  (TB, O)
    h = jnp.dot(x_ref[...], w1_ref[...], preferred_element_type=jnp.float32)
    h = jnp.maximum(h + b1_ref[...], 0.0)
    z = jnp.dot(h, w2_ref[...], preferred_element_type=jnp.float32) + b2_ref[...]
    # numerically-stable log_softmax over the last (class) dim
    m = jnp.max(z, axis=-1, keepdims=True)
    z = z - m
    lse = jnp.log(jnp.sum(jnp.exp(z), axis=-1, keepdims=True))
    o_ref[...] = z - lse


def mlp_forward(params, x, *, block_rows=256):
    """log_softmax(fc2(relu(fc1(x)))), fused in one Pallas kernel.

    x: (N, input_dim) float32.  Returns (N, output_dim) float32 log-probs.
    """
    w1, b1 = params["w_fc1"], params["b_fc1"]      # (D, H), (1, H)
    w2, b2 = params["w_fc2"], params["b_fc2"]      # (H, O), (1, O)
    N, D = x.shape
    H = w1.shape[1]
    O = w2.shape[1]

    # Row-tile size: multiple of 8 (sublane), capped so one step's tile stays
    # tiny (well under every generation's scoped-VMEM limit, incl. v7x 64 MiB).
    tb = min(block_rows, ((N + 7) // 8) * 8)
    n_pad = pl.cdiv(N, tb) * tb
    if n_pad != N:
        x = jnp.pad(x, ((0, n_pad - N), (0, 0)))

    out = pl.pallas_call(
        _mlp_kernel,
        out_shape=jax.ShapeDtypeStruct((n_pad, O), jnp.float32),
        grid=(n_pad // tb,),
        in_specs=[
            pl.BlockSpec((tb, D), lambda i: (i, 0)),
            # weights/biases: constant index maps -> stay resident in VMEM
            pl.BlockSpec((D, H), lambda i: (0, 0)),
            pl.BlockSpec((1, H), lambda i: (0, 0)),
            pl.BlockSpec((H, O), lambda i: (0, 0)),
            pl.BlockSpec((1, O), lambda i: (0, 0)),
        ],
        out_specs=pl.BlockSpec((tb, O), lambda i: (i, 0)),
        compiler_params=pltpu.CompilerParams(
            dimension_semantics=("parallel",)),   # shards across v7x's 2 TCs
    )(x, w1, b1, w2, b2)

    return out[:N]


# ---------------------------------------------------------------------------
# Parameter init (PyTorch nn.Linear default: U(-1/sqrt(fan_in), +1/sqrt(fan_in)))
# Weights are stored pre-transposed as (in, out) so no runtime transpose.
# NOTE: when porting a real torch checkpoint, torch.nn.Linear stores (out, in);
# transpose once at load time.
# ---------------------------------------------------------------------------
def init_params(key, input_dim=86, hidden_dim=32, output_dim=2):
    def uniform(k, shape, fan_in):
        bound = 1.0 / float(fan_in) ** 0.5
        return jax.random.uniform(k, shape, jnp.float32, -bound, bound)

    k1, k2, k3, k4 = jax.random.split(key, 4)
    return {
        "w_fc1": uniform(k1, (input_dim, hidden_dim), input_dim),
        "b_fc1": uniform(k2, (1, hidden_dim), input_dim),
        "w_fc2": uniform(k3, (hidden_dim, output_dim), hidden_dim),
        "b_fc2": uniform(k4, (1, output_dim), hidden_dim),
    }


# ---------------------------------------------------------------------------
# Pure-JAX reference for correctness checking
# ---------------------------------------------------------------------------
def mlp_reference(params, x):
    h = jnp.maximum(x @ params["w_fc1"] + params["b_fc1"], 0.0)
    z = h @ params["w_fc2"] + params["b_fc2"]
    return jax.nn.log_softmax(z, axis=1)


if __name__ == "__main__":
    key = jax.random.PRNGKey(0)
    pkey, xkey = jax.random.split(key)

    INPUT_DIM, HIDDEN, OUTPUT_DIM = 86, 32, 2
    N = 16  # small batch; with block_rows=8 the grid has 2 parallel steps

    params = init_params(pkey, INPUT_DIM, HIDDEN, OUTPUT_DIM)
    x = jax.random.normal(xkey, (N, INPUT_DIM), jnp.float32)

    fwd = jax.jit(lambda p, xx: mlp_forward(p, xx, block_rows=8))
    out = jax.block_until_ready(fwd(params, x))

    ref = mlp_reference(params, x)
    assert out.shape == (N, OUTPUT_DIM)
    assert jnp.all(jnp.isfinite(out))
    assert jnp.allclose(out, ref, atol=1e-5, rtol=1e-5)
    print("KERNEL_OK")
</pallas_src>

<mosaic_0001>
module attributes {stable_mosaic.version = 11 : i64} {
  func.func @_mlp_kernel(%arg0: i32, %arg1: memref<8x86xf32, #tpu.memory_space<vmem>>, %arg2: memref<86x32xf32, #tpu.memory_space<vmem>>, %arg3: memref<1x32xf32, #tpu.memory_space<vmem>>, %arg4: memref<32x2xf32, #tpu.memory_space<vmem>>, %arg5: memref<1x2xf32, #tpu.memory_space<vmem>>, %arg6: memref<8x2xf32, #tpu.memory_space<vmem>>) attributes {dimension_semantics = [#tpu.dimension_semantics<parallel>], iteration_bounds = array<i64: 2>, scalar_prefetch = 0 : i64, scratch_operands = 0 : i64, tpu.core_type = #tpu.core_type<tc>, window_params = [{transform_indices = @transform_0, window_bounds = array<i64: 8, 86>}, {pipeline_mode = #tpu.pipeline_mode<synchronous>, transform_indices = @transform_1, window_bounds = array<i64: 86, 32>}, {pipeline_mode = #tpu.pipeline_mode<synchronous>, transform_indices = @transform_2, window_bounds = array<i64: 1, 32>}, {pipeline_mode = #tpu.pipeline_mode<synchronous>, transform_indices = @transform_3, window_bounds = array<i64: 32, 2>}, {pipeline_mode = #tpu.pipeline_mode<synchronous>, transform_indices = @transform_4, window_bounds = array<i64: 1, 2>}, {transform_indices = @transform_5, window_bounds = array<i64: 8, 2>}]} {
    %c0 = arith.constant 0 : index
    %c0_0 = arith.constant 0 : index
    %0 = vector.load %arg1[%c0, %c0_0] : memref<8x86xf32, #tpu.memory_space<vmem>>, vector<8x86xf32>
    %c0_1 = arith.constant 0 : index
    %c0_2 = arith.constant 0 : index
    %1 = vector.load %arg2[%c0_1, %c0_2] : memref<86x32xf32, #tpu.memory_space<vmem>>, vector<86x32xf32>
    %cst = arith.constant dense<0.000000e+00> : vector<8x32xf32>
    %2 = tpu.matmul %0, %1, %cst {dimension_numbers = #tpu.dot_dimension_numbers<[1], [0], [0], [1], [0, 0, 1, 1], [], []>} : vector<8x86xf32>, vector<86x32xf32>, vector<8x32xf32> -> vector<8x32xf32>
    %c0_3 = arith.constant 0 : index
    %c0_4 = arith.constant 0 : index
    %3 = vector.load %arg3[%c0_3, %c0_4] : memref<1x32xf32, #tpu.memory_space<vmem>>, vector<1x32xf32>
    %4 = vector.broadcast %3 : vector<1x32xf32> to vector<8x32xf32>
    %5 = arith.addf %2, %4 : vector<8x32xf32>
    %cst_5 = arith.constant 0.000000e+00 : f32
    %6 = vector.broadcast %cst_5 : f32 to vector<8x32xf32>
    %7 = arith.maximumf %5, %6 : vector<8x32xf32>
    %c0_6 = arith.constant 0 : index
    %c0_7 = arith.constant 0 : index
    %8 = vector.load %arg4[%c0_6, %c0_7] : memref<32x2xf32, #tpu.memory_space<vmem>>, vector<32x2xf32>
    %cst_8 = arith.constant dense<0.000000e+00> : vector<8x2xf32>
    %9 = tpu.matmul %7, %8, %cst_8 {dimension_numbers = #tpu.dot_dimension_numbers<[1], [0], [0], [1], [0, 0, 1, 1], [], []>} : vector<8x32xf32>, vector<32x2xf32>, vector<8x2xf32> -> vector<8x2xf32>
    %c0_9 = arith.constant 0 : index
    %c0_10 = arith.constant 0 : index
    %10 = vector.load %arg5[%c0_9, %c0_10] : memref<1x2xf32, #tpu.memory_space<vmem>>, vector<1x2xf32>
    %11 = vector.broadcast %10 : vector<1x2xf32> to vector<8x2xf32>
    %12 = arith.addf %9, %11 : vector<8x2xf32>
    %cst_11 = arith.constant dense<0xFF800000> : vector<8xf32>
    %13 = vector.multi_reduction <maximumf>, %12, %cst_11 [1] : vector<8x2xf32> to vector<8xf32>
    %14 = vector.shape_cast %13 : vector<8xf32> to vector<8x1xf32>
    %15 = vector.broadcast %14 : vector<8x1xf32> to vector<8x2xf32>
    %16 = arith.subf %12, %15 : vector<8x2xf32>
    %17 = math.exp %16 : vector<8x2xf32>
    %cst_12 = arith.constant dense<0.000000e+00> : vector<8xf32>
    %18 = vector.multi_reduction <add>, %17, %cst_12 [1] : vector<8x2xf32> to vector<8xf32>
    %19 = vector.shape_cast %18 : vector<8xf32> to vector<8x1xf32>
    %20 = math.log %19 : vector<8x1xf32>
    %21 = vector.broadcast %20 : vector<8x1xf32> to vector<8x2xf32>
    %22 = arith.subf %16, %21 : vector<8x2xf32>
    %c0_13 = arith.constant 0 : index
    %c0_14 = arith.constant 0 : index
    %23 = vector.load %arg6[%c0_13, %c0_14] : memref<8x2xf32, #tpu.memory_space<vmem>>, vector<8x2xf32>
    tpu.vector_store %arg6[%c0_13, %c0_14], %22 {strides = array<i32>} : memref<8x2xf32, #tpu.memory_space<vmem>>, vector<8x2xf32>,
    return
  }
  func.func @transform_0(%arg0: i32) -> (i32, i32) {
    %c0_i32 = arith.constant 0 : i32
    %c0_i32_0 = arith.constant 0 : i32
    return %arg0, %c0_i32 : i32, i32
  }
  func.func @transform_1(%arg0: i32) -> (i32, i32) {
    %c0_i32 = arith.constant 0 : i32
    %c0_i32_0 = arith.constant 0 : i32
    %c0_i32_1 = arith.constant 0 : i32
    return %c0_i32, %c0_i32_0 : i32, i32
  }
  func.func @transform_2(%arg0: i32) -> (i32, i32) {
    %c0_i32 = arith.constant 0 : i32
    %c0_i32_0 = arith.constant 0 : i32
    %c0_i32_1 = arith.constant 0 : i32
    return %c0_i32, %c0_i32_0 : i32, i32
  }
  func.func @transform_3(%arg0: i32) -> (i32, i32) {
    %c0_i32 = arith.constant 0 : i32
    %c0_i32_0 = arith.constant 0 : i32
    %c0_i32_1 = arith.constant 0 : i32
    return %c0_i32, %c0_i32_0 : i32, i32
  }
  func.func @transform_4(%arg0: i32) -> (i32, i32) {
    %c0_i32 = arith.constant 0 : i32
    %c0_i32_0 = arith.constant 0 : i32
    %c0_i32_1 = arith.constant 0 : i32
    return %c0_i32, %c0_i32_0 : i32, i32
  }
  func.func @transform_5(%arg0: i32) -> (i32, i32) {
    %c0_i32 = arith.constant 0 : i32
    %c0_i32_0 = arith.constant 0 : i32
    return %arg0, %c0_i32 : i32, i32
  }
}

</mosaic_0001>

<llo_original>
// kernel: _lambda_.1
$region0: #{_lambda_.1}
  #allocation0 [shape = 'u32[]', space=smem, size = 0x4, offset = 0x4, fixed_abs, tag = 'smem constant byte address 0x4 - core index']
  #allocation1 [shape = 'u32[72,128]{1,0:T(1,128)}', space=vmem, size = 0x9000, scoped, tag = 'internal scratch']
  %s0 = inlined_call_operand.vmem [shape: f32[16,86], index: 0, kind: input, shape index: {}]
  %s1 = inlined_call_operand.vmem [shape: f32[86,32], index: 1, kind: input, shape index: {}]
  %s2 = inlined_call_operand.vmem [shape: f32[1,32], index: 2, kind: input, shape index: {}]
  %s3 = inlined_call_operand.vmem [shape: f32[32,2], index: 3, kind: input, shape index: {}]
  %s4 = inlined_call_operand.vmem [shape: f32[1,2], index: 4, kind: input, shape index: {}]
  %s5 = inlined_call_operand.vmem [shape: f32[16,2], index: 5, kind: output, shape index: {}]
  %s6 = sld [smem:[#allocation0]]
  $region53: #{_lambda_.1} parent=0
    _
  %s8 = ssub.s32 1, %s6
  %s9 = scalar_select 0, %s8, %s6
  loop: start=0, step=1, limit=4
  $region2: #{_lambda_.1} parent=0 // loop_pre_header
    _
  $region3: #{_lambda_.1} parent=0 // loop_header
    %s11 = sphi 0, %s15
    %p12 = scmp.ge.s32.totalorder %s11, 4
    %s21 = sphi 0, %s23
    %s24 = sphi 0, %s21
    %s25 = sphi 0, %s24
    %s41 = sphi 0, %s25
    %s45 = sphi 0, %s45
    %s47 = sphi 0, %s45
    %s48 = sphi 0, %s47
    %s62 = sphi 0, %s48
    %s66 = sphi 0, %s66
    %s68 = sphi 0, %s66
    %s69 = sphi 0, %s68
    %s83 = sphi 0, %s69
    %s87 = sphi 0, %s87
    %s89 = sphi 0, %s87
    %s90 = sphi 0, %s89
    %s104 = sphi 0, %s90
    %s108 = sphi 0, %s108
    %s110 = sphi 0, %s108
    %s111 = sphi 0, %s110
    %s125 = sphi 0, %s111
    %s131 = sphi 0, %s133
    %s134 = sphi 0, %s131
    %s135 = sphi 0, %s134
    %s151 = sphi 0, %s135
  $region4: #{_lambda_.1} parent=0 // loop_header_branch
    %14 = sbr.rel (%p12) target = $region8
  $region5: #{_lambda_.1} parent=0 // loop_body
    %s16 = ssub.s32 %s11, 1
    %s17 = ssub.s32 %s11, 2
    %s18 = sadd.s32 %s11, 1
    %s19 = ssub.s32 %s11, %s18
    %p20 = scmp.eq.s32.totalorder %s19, 0
    %s22 = sadd.s32 %s21, 1
    %s23 = scalar_select %p20, %s21, %s22
    %p26 = pneg %p20
    %p27 = scmp.eq.s32.totalorder %s11, 1
    %p28 = por %p26, %p27
    %p29 = scmp.ne.s32.totalorder %s21, %s24
    %p30 = scmp.eq.s32.totalorder %s11, 0
    %p31 = por %p29, %p30
    %p32 = scmp.ne.s32.totalorder %s21, %s24
    %p33 = scmp.eq.s32.totalorder %s16, 1
    %p34 = por %p32, %p33
    %p35 = scmp.ne.s32.totalorder %s24, %s25
    %p36 = scmp.eq.s32.totalorder %s16, 0
    %p37 = por %p35, %p36
    %p38 = scmp.ne.s32.totalorder %s24, %s25
    %p39 = scmp.eq.s32.totalorder %s17, 1
    %p40 = por %p38, %p39
    %p42 = scmp.ne.s32.totalorder %s25, %s41
    %p43 = scmp.eq.s32.totalorder %s17, 0
    %p44 = por %p42, %p43
    %s46 = sadd.s32 %s45, 1
    %p49 = scmp.eq.s32.totalorder %s11, 1
    %p50 = scmp.ne.s32.totalorder %s45, %s47
    %p51 = scmp.eq.s32.totalorder %s11, 0
    %p52 = por %p50, %p51
    %p53 = scmp.ne.s32.totalorder %s45, %s47
    %p54 = scmp.eq.s32.totalorder %s16, 1
    %p55 = por %p53, %p54
    %p56 = scmp.ne.s32.totalorder %s47, %s48
    %p57 = scmp.eq.s32.totalorder %s16, 0
    %p58 = por %p56, %p57
    %p59 = scmp.ne.s32.totalorder %s47, %s48
    %p60 = scmp.eq.s32.totalorder %s17, 1
    %p61 = por %p59, %p60
    %p63 = scmp.ne.s32.totalorder %s48, %s62
    %p64 = scmp.eq.s32.totalorder %s17, 0
    %p65 = por %p63, %p64
    %s67 = sadd.s32 %s66, 1
    %p70 = scmp.eq.s32.totalorder %s11, 1
    %p71 = scmp.ne.s32.totalorder %s66, %s68
    %p72 = scmp.eq.s32.totalorder %s11, 0
    %p73 = por %p71, %p72
    %p74 = scmp.ne.s32.totalorder %s66, %s68
    %p75 = scmp.eq.s32.totalorder %s16, 1
    %p76 = por %p74, %p75
    %p77 = scmp.ne.s32.totalorder %s68, %s69
    %p78 = scmp.eq.s32.totalorder %s16, 0
    %p79 = por %p77, %p78
    %p80 = scmp.ne.s32.totalorder %s68, %s69
    %p81 = scmp.eq.s32.totalorder %s17, 1
    %p82 = por %p80, %p81
    %p84 = scmp.ne.s32.totalorder %s69, %s83
    %p85 = scmp.eq.s32.totalorder %s17, 0
    %p86 = por %p84, %p85
    %s88 = sadd.s32 %s87, 1
    %p91 = scmp.eq.s32.totalorder %s11, 1
    %p92 = scmp.ne.s32.totalorder %s87, %s89
    %p93 = scmp.eq.s32.totalorder %s11, 0
    %p94 = por %p92, %p93
    %p95 = scmp.ne.s32.totalorder %s87, %s89
    %p96 = scmp.eq.s32.totalorder %s16, 1
    %p97 = por %p95, %p96
    %p98 = scmp.ne.s32.totalorder %s89, %s90
    %p99 = scmp.eq.s32.totalorder %s16, 0
    %p100 = por %p98, %p99
    %p101 = scmp.ne.s32.totalorder %s89, %s90
    %p102 = scmp.eq.s32.totalorder %s17, 1
    %p103 = por %p101, %p102
    %p105 = scmp.ne.s32.totalorder %s90, %s104
    %p106 = scmp.eq.s32.totalorder %s17, 0
    %p107 = por %p105, %p106
    %s109 = sadd.s32 %s108, 1
    %p112 = scmp.eq.s32.totalorder %s11, 1
    %p113 = scmp.ne.s32.totalorder %s108, %s110
    %p114 = scmp.eq.s32.totalorder %s11, 0
    %p115 = por %p113, %p114
    %p116 = scmp.ne.s32.totalorder %s108, %s110
    %p117 = scmp.eq.s32.totalorder %s16, 1
    %p118 = por %p116, %p117
    %p119 = scmp.ne.s32.totalorder %s110, %s111
    %p120 = scmp.eq.s32.totalorder %s16, 0
    %p121 = por %p119, %p120
    %p122 = scmp.ne.s32.totalorder %s110, %s111
    %p123 = scmp.eq.s32.totalorder %s17, 1
    %p124 = por %p122, %p123
    %p126 = scmp.ne.s32.totalorder %s111, %s125
    %p127 = scmp.eq.s32.totalorder %s17, 0
    %p128 = por %p126, %p127
    %s129 = ssub.s32 %s11, %s18
    %p130 = scmp.eq.s32.totalorder %s129, 0
    %s132 = sadd.s32 %s131, 1
    %s133 = scalar_select %p130, %s131, %s132
    %p136 = pneg %p130
    %p137 = scmp.eq.s32.totalorder %s11, 1
    %p138 = por %p136, %p137
    %p139 = scmp.ne.s32.totalorder %s131, %s134
    %p140 = scmp.eq.s32.totalorder %s11, 0
    %p141 = por %p139, %p140
    %p142 = scmp.ne.s32.totalorder %s131, %s134
    %p143 = scmp.eq.s32.totalorder %s16, 1
    %p144 = por %p142, %p143
    %p145 = scmp.ne.s32.totalorder %s134, %s135
    %p146 = scmp.eq.s32.totalorder %s16, 0
    %p147 = por %p145, %p146
    %p148 = scmp.ne.s32.totalorder %s134, %s135
    %p149 = scmp.eq.s32.totalorder %s17, 1
    %p150 = por %p148, %p149
    %p152 = scmp.ne.s32.totalorder %s135, %s151
    %p153 = scmp.eq.s32.totalorder %s17, 0
    %p154 = por %p152, %p153
    %p155 = scmp.le.s32.totalorder 1, %s11
    %p156 = scmp.lt.s32.totalorder %s11, 3
    %p157 = pnand %p155, %p156
    %p158 = pneg %p157
    // Predicated region
    $region9: #{_lambda_.1} parent=5 // pred_check
      _
    $region10: #{_lambda_.1} parent=5 // pred_check_branch
      %160 = sbr.rel (%p157) target = $region12
    $region11: #{_lambda_.1} parent=5 // pred_region
      %s161 = ssub.s32 %s11, 1
      // Predicated region
      $region13: #{_lambda_.1} parent=11 // pred_check
        %p162 = pneg %p58
      $region14: #{_lambda_.1} parent=11 // pred_check_branch
        %164 = sbr.rel (%p162) target = $region16
      $region15: #{_lambda_.1} parent=11 // pred_region
        _
      $region16: #{_lambda_.1} parent=11 // pred_fallthru
        _
      // Predicated region
      $region17: #{_lambda_.1} parent=11 // pred_check
        %p165 = pneg %p79
      $region18: #{_lambda_.1} parent=11 // pred_check_branch
        %167 = sbr.rel (%p165) target = $region20
      $region19: #{_lambda_.1} parent=11 // pred_region
        _
      $region20: #{_lambda_.1} parent=11 // pred_fallthru
        _
      // Predicated region
      $region21: #{_lambda_.1} parent=11 // pred_check
        %p168 = pneg %p100
      $region22: #{_lambda_.1} parent=11 // pred_check_branch
        %170 = sbr.rel (%p168) target = $region24
      $region23: #{_lambda_.1} parent=11 // pred_region
        _
      $region24: #{_lambda_.1} parent=11 // pred_fallthru
        _
      // Predicated region
      $region25: #{_lambda_.1} parent=11 // pred_check
        %p171 = pneg %p121
      $region26: #{_lambda_.1} parent=11 // pred_check_branch
        %173 = sbr.rel (%p171) target = $region28
      $region27: #{_lambda_.1} parent=11 // pred_region
        _
      $region28: #{_lambda_.1} parent=11 // pred_fallthru
        _
    $region12: #{_lambda_.1} parent=5 // pred_fallthru
      _
    %p174 = scmp.lt.s32.totalorder %s11, 2
    // Predicated region
    $region29: #{_lambda_.1} parent=5 // pred_check
      %p175 = pneg %p174
    $region30: #{_lambda_.1} parent=5 // pred_check_branch
      %177 = sbr.rel (%p175) target = $region32
    $region31: #{_lambda_.1} parent=5 // pred_region
      // Predicated region
      $region33: #{_lambda_.1} parent=31 // pred_check
        %p178 = pneg %p31
      $region34: #{_lambda_.1} parent=31 // pred_check_branch
        %180 = sbr.rel (%p178) target = $region36
      $region35: #{_lambda_.1} parent=31 // pred_region
        %p181 = scmp.lt.s32.totalorder %s11, 1
        %s182 = scalar_select %p181, %s11, 1
        %s183 = smul.addr %s182, 8
        %s184 = scalar_lea.vmem %s0, %s183
      $region36: #{_lambda_.1} parent=31 // pred_fallthru
        _
    $region32: #{_lambda_.1} parent=5 // pred_fallthru
      _
    %p185 = scmp.le.s32.totalorder 1, %s11
    %p186 = scmp.lt.s32.totalorder %s11, 3
    %p187 = pnand %p185, %p186
    %p188 = pneg %p187
    // Predicated region
    $region37: #{_lambda_.1} parent=5 // pred_check
      _
    $region38: #{_lambda_.1} parent=5 // pred_check_branch
      %190 = sbr.rel (%p187) target = $region40
    $region39: #{_lambda_.1} parent=5 // pred_region
      %s191 = ssub.s32 %s11, 1
      %p192 = scmp.lt.s32.totalorder %s16, 1
      %s193 = scalar_select %p192, %s16, 1
      %s194 = smul.addr %s193, 8
      %s195 = scalar_lea.vmem %s0, %s194
      %p196 = pneg %p37
      %p197 = pneg %p34
      %p198 = pneg %p58
      %p199 = pneg %p55
      %p200 = pneg %p79
      %p201 = pneg %p76
      %p202 = pneg %p100
      %p203 = pneg %p97
      %p204 = pneg %p121
      %p205 = pneg %p118
      %p206 = pneg %p147
      %p207 = pneg %p144
      %p208 = scmp.lt.s32.totalorder %s16, 1
      %s209 = scalar_select %p208, %s16, 1
      %s210 = smul.addr %s209, 8
      %s211 = scalar_lea.vmem %s5, %s210
      %p212 = scmp.lt.s32.totalorder %s16, 1
      %s213 = scalar_select %p212, %s16, 1
      %s214 = smul.addr %s213, 8
      %s215 = scalar_lea.vmem %s0, %s214
      %p216 = scmp.lt.s32.totalorder %s16, 1
      %s217 = scalar_select %p216, %s16, 1
      %s218 = smul.addr %s217, 8
      %s219 = scalar_lea.vmem %s5, %s218
      %v220 = vld [vmem:[%s215] sm:$0xff]
      %v221 = vld [vmem:[%s1] sm:$0xff]
      %v222 = vld [vmem:[%s1 + $0x8] sm:$0xff]
      %v223 = vld [vmem:[%s1 + $0x10] sm:$0xff]
      %v224 = vld [vmem:[%s1 + $0x18] sm:$0xff]
      %v225 = vld [vmem:[%s1 + $0x20] sm:$0xff]
      %v226 = vld [vmem:[%s1 + $0x28] sm:$0xff]
      %v227 = vld [vmem:[%s1 + $0x30] sm:$0xff]
      %v228 = vld [vmem:[%s1 + $0x38] sm:$0xff]
      %v229 = vld [vmem:[%s1 + $0x40] sm:$0xff]
      %v230 = vld [vmem:[%s1 + $0x48] sm:$0xff]
      %v231 = vld [vmem:[%s1 + $0x50] sm:$0x3f]
      %v232 = vld [vmem:[%s2] sm:$0x1]
      %v234 = vperm.slane %v232, 0
      %vm236 = vcmask 703488
      %v238 = vsel %vm236, %v220, 0
      %vm240 = vcmask 1045504
      %v242 = vsel %vm240, %v231, 0
      %244 = vmatpush.msra.mxu0 0.0
      %245 = vmatpush.msra.mxu0 0.0
      %246 = vmatpush.msra.mxu0 0.0
      %247 = vmatpush.msra.mxu0 0.0
      %248 = vmatpush.msra.mxu0 0.0
      %249 = vmatpush.msra.mxu0 %v242
      %250 = vmatpush.msra.mxu0 %v230
      %251 = vmatpush.msra.mxu0 %v229
      %252 = vmatpush.msra.mxu0 %v228
      %253 = vmatpush.msra.mxu0 %v227
      %254 = vmatpush.msra.mxu0 %v226
      %255 = vmatpush.msra.mxu0 %v225
      %256 = vmatpush.msra.mxu0 %v224
      %257 = vmatpush.msra.mxu0 %v223
      %258 = vmatpush.msra.mxu0 %v222
      %259 = vmatpush.msra.mxu0 %v221
      %260 = vmatmul.f32.gmra.mxu0 %v238
      %v261 = vpop.f32.mrf.mxu0
      %v262 = vadd.f32 %v234, %v261
      %263 = vdwg.mxu0
      %v264 = vmax.f32 %v262, 0.0
      %v265 = vld [vmem:[%s3] sm:$0xff]
      %v266 = vld [vmem:[%s3 + $0x8] sm:$0xff]
      %v267 = vld [vmem:[%s3 + $0x10] sm:$0xff]
      %v268 = vld [vmem:[%s3 + $0x18] sm:$0xff]
      %v269 = vld [vmem:[%s4] sm:$0x1]
      %v271 = vperm.slane %v269, 0
      %vm273 = vcmask 261120
      %v275 = vsel %vm273, %v264, 0
      %277 = vmatpush.msra.mxu0 0.0
      %278 = vmatpush.msra.mxu0 0.0
      %279 = vmatpush.msra.mxu0 0.0
      %280 = vmatpush.msra.mxu0 0.0
      %281 = vmatpush.msra.mxu0 0.0
      %282 = vmatpush.msra.mxu0 0.0
      %283 = vmatpush.msra.mxu0 0.0
      %284 = vmatpush.msra.mxu0 0.0
      %285 = vmatpush.msra.mxu0 0.0
      %286 = vmatpush.msra.mxu0 0.0
      %287 = vmatpush.msra.mxu0 0.0
      %288 = vmatpush.msra.mxu0 0.0
      %289 = vmatpush.msra.mxu0 %v268
      %290 = vmatpush.msra.mxu0 %v267
      %291 = vmatpush.msra.mxu0 %v266
      %292 = vmatpush.msra.mxu0 %v265
      %293 = vmatmul.f32.gmra.mxu0 %v275
      %v294 = vpop.f32.mrf.mxu0
      %v295 = vadd.f32 %v271, %v294
      %296 = vdwg.mxu0
      %vm297 = vcmask 15360
      %v298 = vsel %vm297, %v295, -inf
      %299 = vmax.xlane.f32.xlu0 %v298
      %v300 = vpop.xlane.xlu0 %299
      %v301 = vsub.f32 %v295, %v300
      %v302 = vmul.f32 %v301, 1.442695
      %v303 = vpow.pop %v302
      %v304 = vsel %vm297, %v303, 0.0
      %305 = vadd.xlane.f32.xlu0 %v304
      %v306 = vpop.xlane.xlu0 %305
      %v307 = vlog2.pop %v306
      %v308 = vmul.f32 %v307, 0.6931472
      %v309 = vsub.f32 %v301, %v308
      %310 = vst.msk [vmem:[%s219] sm:$0xff] %vm297, %v309
      %p311 = scmp.lt.s32.totalorder %s16, 1
      %s312 = scalar_select %p311, %s16, 1
      %s313 = smul.addr %s312, 8
      %s314 = scalar_lea.vmem %s5, %s313
      // Predicated region
      $region41: #{_lambda_.1} parent=39 // pred_check
        %p315 = pneg %p144
      $region42: #{_lambda_.1} parent=39 // pred_check_branch
        %317 = sbr.rel (%p315) target = $region44
      $region43: #{_lambda_.1} parent=39 // pred_region
        _
      $region44: #{_lambda_.1} parent=39 // pred_fallthru
        _
    $region40: #{_lambda_.1} parent=5 // pred_fallthru
      _
    %p318 = scmp.le.s32.totalorder 2, %s11
    // Predicated region
    $region45: #{_lambda_.1} parent=5 // pred_check
      %p319 = pneg %p318
    $region46: #{_lambda_.1} parent=5 // pred_check_branch
      %321 = sbr.rel (%p319) target = $region48
    $region47: #{_lambda_.1} parent=5 // pred_region
      %s322 = ssub.s32 %s11, 2
      // Predicated region
      $region49: #{_lambda_.1} parent=47 // pred_check
        %p323 = pneg %p150
      $region50: #{_lambda_.1} parent=47 // pred_check_branch
        %325 = sbr.rel (%p323) target = $region52
      $region51: #{_lambda_.1} parent=47 // pred_region
        %p326 = scmp.lt.s32.totalorder %s17, 1
        %s327 = scalar_select %p326, %s17, 1
        %s328 = smul.addr %s327, 8
        %s329 = scalar_lea.vmem %s5, %s328
      $region52: #{_lambda_.1} parent=47 // pred_fallthru
        _
    $region48: #{_lambda_.1} parent=5 // pred_fallthru
      _
  $region6: #{_lambda_.1} parent=0 // loop_footer
    %s15 = sadd.s32 1, %s11
  $region7: #{_lambda_.1} parent=0 // loop_footer_branch
    %10 = sbr.rel target = $region3
  $region8: #{_lambda_.1} parent=0 // loop_exit
    _

</llo_original>
